<compile_context>
chip_gen: v7x
topology: tpu7x:2x2x1
jax: 0.10.0
libtpu: 0.0.40
codegen_flags: <defaults>
</compile_context>

<pallas_src>
import functools

import jax
import jax.numpy as jnp
from jax import lax
from jax.experimental import pallas as pl
from jax.experimental.pallas import tpu as pltpu


def _vq_kernel(x_ref, e_ref, esq_ref, q_ref, counts_ref, sse_ref, *, hw, thw):
    """Quantize one (D, thw) channel-major spatial tile of one batch element."""
    t = pl.program_id(1)          # spatial tile index (inner, accumulating axis)

    @pl.when(t == 0)
    def _():
        counts_ref[...] = jnp.zeros_like(counts_ref)
        sse_ref[...] = jnp.zeros_like(sse_ref)

    x = x_ref[...].astype(jnp.float32)          # (D, thw)
    e = e_ref[...].astype(jnp.float32)          # (K, D)  resident codebook
    e_sq = esq_ref[...]                         # (K, 1)  precomputed ||e||^2
    K = e.shape[0]

    # Distance proxy: ||e||^2 - 2 e.x.  The per-column ||x||^2 term is a
    # constant w.r.t. the per-column argmin so it is dropped.  (Accepted
    # tolerance: f32 rounding of the proxy could flip argmin on exact ties.)
    xe = jnp.dot(e, x, preferred_element_type=jnp.float32)          # (K, thw)
    d = e_sq - 2.0 * xe                                             # (K, thw)

    # argmin over codes (first minimal index) per spatial column; the iota is
    # a (K,1) column that broadcasts (no materialized (K,thw) int32 tensor).
    min_d = jnp.min(d, axis=0, keepdims=True)                       # (1, thw)
    iota_k = lax.broadcasted_iota(jnp.int32, (K, 1), 0)             # (K, 1)
    idx = jnp.min(jnp.where(d <= min_d, iota_k, K),
                  axis=0, keepdims=True)                            # (1, thw)

    # Fold column validity (partial boundary tile) into the index: invalid
    # columns are assigned code K, so their one-hot column is all-zero and
    # they contribute nothing to counts or q.
    col = t * thw + lax.broadcasted_iota(jnp.int32, (1, thw), 1)    # (1, thw)
    valid = col < hw
    idx = jnp.where(valid, idx, K)

    onehot = (iota_k == idx).astype(jnp.float32)                    # (K, thw)

    # quantized = e^T @ onehot (contract K; no in-kernel transpose), lane-dense
    # store of the (D, thw) tile.
    q = lax.dot_general(e, onehot, (((0,), (0,)), ((), ())),
                        preferred_element_type=jnp.float32)         # (D, thw)
    q_ref[...] = q.astype(q_ref.dtype)

    # Per-batch-element accumulators (output blocks resident across the inner
    # spatial axis).  Counts need no mask (invalid columns are all-zero).
    counts_ref[...] += jnp.sum(onehot, axis=1, keepdims=True)       # (K, 1)

    err = q - x
    sse_col = jnp.sum(err * err, axis=0, keepdims=True)             # (1, thw)
    # Mask garbage from OOB reads in the partial boundary tile (NaN-safe:
    # jnp.where selects, it does not multiply).
    sse_ref[...] += jnp.where(valid, sse_col, 0.0)


def _vq_core(x_bdhw, embeddings, *, thw_max=4096,
             vmem_limit_bytes=48 * 1024 * 1024):
    """Quantize (B, D, HW) channel-major activations against a (K, D) codebook.

    Returns (q (B, D, HW), counts (B, K, 1), sse (B, 1, thw)).
    """
    B, D, HW = x_bdhw.shape
    K = embeddings.shape[0]

    # Spatial tile width: full extent if it fits, otherwise a lane-dense
    # multiple of 128; the partial last tile is masked in-kernel.
    if HW <= thw_max:
        thw = HW
    else:
        thw = max(128, (thw_max // 128) * 128)
    T = pl.cdiv(HW, thw)

    # Hoisted codebook-side work: ||e||^2 computed once, resident in VMEM.
    e_sq = jnp.sum(embeddings.astype(jnp.float32) ** 2,
                   axis=1, keepdims=True)                            # (K, 1)

    kernel = functools.partial(_vq_kernel, hw=HW, thw=thw)

    q, counts, sse = pl.pallas_call(
        kernel,
        out_shape=(
            jax.ShapeDtypeStruct((B, D, HW), x_bdhw.dtype),
            jax.ShapeDtypeStruct((B, K, 1), jnp.float32),
            jax.ShapeDtypeStruct((B, 1, thw), jnp.float32),
        ),
        grid_spec=pltpu.PrefetchScalarGridSpec(
            num_scalar_prefetch=0,
            grid=(B, T),
            in_specs=[
                pl.BlockSpec((None, D, thw), lambda b, t: (b, 0, t)),  # x tile
                pl.BlockSpec((K, D), lambda b, t: (0, 0)),    # codebook (res.)
                pl.BlockSpec((K, 1), lambda b, t: (0, 0)),    # ||e||^2 (res.)
            ],
            out_specs=[
                pl.BlockSpec((None, D, thw), lambda b, t: (b, 0, t)),  # q tile
                pl.BlockSpec((None, K, 1), lambda b, t: (b, 0, 0)),    # counts
                pl.BlockSpec((None, 1, thw), lambda b, t: (b, 0, 0)),  # sse
            ],
        ),
        compiler_params=pltpu.CompilerParams(
            # Batch is the natural parallel axis (2-TC split on v7x when B>=2;
            # plain outer loop on single-TC v5e/v6e).  For B==1 on v7x a
            # spatial shard axis could be added, at the cost of tail balance.
            dimension_semantics=("parallel", "arbitrary"),
            # 48 MiB fits v7x's 64 MiB VMEM as well as v5e/v6e's 128 MiB.
            vmem_limit_bytes=vmem_limit_bytes),
    )(x_bdhw, embeddings, e_sq)

    return q, counts, sse


def vq_ema_forward(x_nchw, embeddings, commitment_cost, *, thw_max=4096):
    """Eval-mode forward of VectorQuantizerEMA.

    Args:
      x_nchw:      (B, D, H, W) float32 — same layout as the torch module.
      embeddings:  (K, D) float32 codebook.
      commitment_cost: python float.
    Returns:
      (quantized_nchw, loss, perplexity)
    """
    B, D, H, W = x_nchw.shape
    N = B * H * W

    # The NCHW layout is consumed directly by the kernel; merging H and W is
    # a free view (no HBM round trip, unlike the former NCHW<->NHWC permutes).
    x_bdhw = x_nchw.reshape(B, D, H * W)

    q_bdhw, counts, sse = _vq_core(x_bdhw, embeddings, thw_max=thw_max)

    # e_latent_loss = mse(quantized.detach(), inputs)
    e_latent_loss = jnp.sum(sse) / (N * D)
    loss = commitment_cost * e_latent_loss

    # perplexity from average code usage
    avg_probs = jnp.sum(counts, axis=(0, 2)) / N
    perplexity = jnp.exp(-jnp.sum(avg_probs * jnp.log(avg_probs + 1e-10)))

    # straight-through: forward value equals the quantized value.
    quantized = q_bdhw.reshape(B, D, H, W)
    return quantized, loss, perplexity


def _reference(x_nchw, embeddings, commitment_cost):
    """Pure-JAX reference mirroring the torch forward (eval mode)."""
    B, D, H, W = x_nchw.shape
    inputs = jnp.transpose(x_nchw, (0, 2, 3, 1))
    flat = inputs.reshape(-1, D)
    d = (jnp.sum(flat ** 2, axis=1, keepdims=True)
         + jnp.sum(embeddings ** 2, axis=1)
         - 2.0 * flat @ embeddings.T)
    idx = jnp.argmin(d, axis=1)
    enc = jax.nn.one_hot(idx, embeddings.shape[0], dtype=jnp.float32)
    q = (enc @ embeddings).reshape(inputs.shape)
    e_latent_loss = jnp.mean((q - inputs) ** 2)
    loss = commitment_cost * e_latent_loss
    avg_probs = jnp.mean(enc, axis=0)
    perplexity = jnp.exp(-jnp.sum(avg_probs * jnp.log(avg_probs + 1e-10)))
    return jnp.transpose(q, (0, 3, 1, 2)), loss, perplexity


if __name__ == "__main__":
    # Module hyper-params (synthetic, deterministic init).
    num_embeddings = 128      # K
    embedding_dim = 64        # D  (channel dim of the NCHW input)
    commitment_cost = 0.25

    B, H, W = 2, 8, 8

    key = jax.random.PRNGKey(0)
    k_emb, k_x = jax.random.split(key)
    # embeddings.weight.data.normal_()
    embeddings = jax.random.normal(k_emb, (num_embeddings, embedding_dim),
                                   dtype=jnp.float32)
    x = jax.random.normal(k_x, (B, embedding_dim, H, W), dtype=jnp.float32)

    quantized, loss, perplexity = vq_ema_forward(x, embeddings, commitment_cost)
    jax.block_until_ready((quantized, loss, perplexity))

    # Sanity check against a pure-JAX reference.
    q_ref, loss_ref, ppl_ref = _reference(x, embeddings, commitment_cost)
    assert jnp.allclose(quantized, q_ref, atol=1e-5, rtol=1e-5)
    assert jnp.allclose(loss, loss_ref, atol=1e-5, rtol=1e-5)
    assert jnp.allclose(perplexity, ppl_ref, atol=1e-4, rtol=1e-4)

    # Larger, non-tile-multiple spatial extent with a small forced tile to
    # exercise the partial-boundary masking and multi-step accumulation paths.
    k2 = jax.random.PRNGKey(1)
    x2 = jax.random.normal(k2, (3, embedding_dim, 17, 13), dtype=jnp.float32)
    out2 = vq_ema_forward(x2, embeddings, commitment_cost, thw_max=128)
    jax.block_until_ready(out2)
    q2_ref, l2_ref, p2_ref = _reference(x2, embeddings, commitment_cost)
    assert jnp.allclose(out2[0], q2_ref, atol=1e-5, rtol=1e-5)
    assert jnp.allclose(out2[1], l2_ref, atol=1e-5, rtol=1e-5)
    assert jnp.allclose(out2[2], p2_ref, atol=1e-4, rtol=1e-4)

    print("KERNEL_OK")
</pallas_src>

<mosaic_0001>
module attributes {stable_mosaic.version = 11 : i64} {
  func.func @_vq_kernel(%arg0: i32, %arg1: i32, %arg2: memref<1x64x64xf32, #tpu.memory_space<vmem>>, %arg3: memref<128x64xf32, #tpu.memory_space<vmem>>, %arg4: memref<128x1xf32, #tpu.memory_space<vmem>>, %arg5: memref<1x64x64xf32, #tpu.memory_space<vmem>>, %arg6: memref<1x128x1xf32, #tpu.memory_space<vmem>>, %arg7: memref<1x1x64xf32, #tpu.memory_space<vmem>>) attributes {dimension_semantics = [#tpu.dimension_semantics<parallel>, #tpu.dimension_semantics<arbitrary>], iteration_bounds = array<i64: 2, 1>, scalar_prefetch = 0 : i64, scratch_operands = 0 : i64, tpu.core_type = #tpu.core_type<tc>, window_params = [{transform_indices = @transform_0, window_bounds = array<i64: 1, 64, 64>}, {pipeline_mode = #tpu.pipeline_mode<synchronous>, transform_indices = @transform_1, window_bounds = array<i64: 128, 64>}, {pipeline_mode = #tpu.pipeline_mode<synchronous>, transform_indices = @transform_2, window_bounds = array<i64: 128, 1>}, {transform_indices = @transform_3, window_bounds = array<i64: 1, 64, 64>}, {transform_indices = @transform_4, window_bounds = array<i64: 1, 128, 1>}, {transform_indices = @transform_5, window_bounds = array<i64: 1, 1, 64>}]} {
    %c0_i32 = arith.constant 0 : i32
    %0 = arith.cmpi eq, %arg1, %c0_i32 : i32
    %1 = arith.extui %0 : i1 to i32
    %c0_i32_0 = arith.constant 0 : i32
    %2 = arith.cmpi ne, %1, %c0_i32_0 : i32
    scf.if %2 {
      %cst_31 = arith.constant 0.000000e+00 : f32
      %60 = vector.broadcast %cst_31 : f32 to vector<128x1xf32>
      %c0_32 = arith.constant 0 : index
      %c0_33 = arith.constant 0 : index
      %c0_34 = arith.constant 0 : index
      %61 = vector.load %arg6[%c0_32, %c0_33, %c0_34] : memref<1x128x1xf32, #tpu.memory_space<vmem>>, vector<1x128x1xf32>
      %62 = vector.shape_cast %61 : vector<1x128x1xf32> to vector<128x1xf32>
      %63 = vector.shape_cast %60 : vector<128x1xf32> to vector<1x128x1xf32>
      tpu.vector_store %arg6[%c0_32, %c0_33, %c0_34], %63 {strides = array<i32>} : memref<1x128x1xf32, #tpu.memory_space<vmem>>, vector<1x128x1xf32>,
      %cst_35 = arith.constant 0.000000e+00 : f32
      %64 = vector.broadcast %cst_35 : f32 to vector<1x64xf32>
      %c0_36 = arith.constant 0 : index
      %c0_37 = arith.constant 0 : index
      %c0_38 = arith.constant 0 : index
      %65 = vector.load %arg7[%c0_36, %c0_37, %c0_38] : memref<1x1x64xf32, #tpu.memory_space<vmem>>, vector<1x1x64xf32>
      %66 = vector.shape_cast %65 : vector<1x1x64xf32> to vector<1x64xf32>
      %67 = vector.shape_cast %64 : vector<1x64xf32> to vector<1x1x64xf32>
      tpu.vector_store %arg7[%c0_36, %c0_37, %c0_38], %67 {strides = array<i32>} : memref<1x1x64xf32, #tpu.memory_space<vmem>>, vector<1x1x64xf32>,
    } else {
    }
    %c0 = arith.constant 0 : index
    %c0_1 = arith.constant 0 : index
    %c0_2 = arith.constant 0 : index
    %3 = vector.load %arg2[%c0, %c0_1, %c0_2] : memref<1x64x64xf32, #tpu.memory_space<vmem>>, vector<1x64x64xf32>
    %4 = vector.shape_cast %3 : vector<1x64x64xf32> to vector<64x64xf32>
    %c0_3 = arith.constant 0 : index
    %c0_4 = arith.constant 0 : index
    %5 = vector.load %arg3[%c0_3, %c0_4] : memref<128x64xf32, #tpu.memory_space<vmem>>, vector<128x64xf32>
    %c0_5 = arith.constant 0 : index
    %c0_6 = arith.constant 0 : index
    %6 = vector.load %arg4[%c0_5, %c0_6] : memref<128x1xf32, #tpu.memory_space<vmem>>, vector<128x1xf32>
    %cst = arith.constant dense<0.000000e+00> : vector<128x64xf32>
    %7 = tpu.matmul %5, %4, %cst {dimension_numbers = #tpu.dot_dimension_numbers<[1], [0], [0], [1], [0, 0, 1, 1], [], []>} : vector<128x64xf32>, vector<64x64xf32>, vector<128x64xf32> -> vector<128x64xf32>
    %cst_7 = arith.constant 2.000000e+00 : f32
    %8 = vector.broadcast %cst_7 : f32 to vector<128x64xf32>
    %9 = arith.mulf %8, %7 : vector<128x64xf32>
    %10 = vector.broadcast %6 : vector<128x1xf32> to vector<128x64xf32>
    %11 = arith.subf %10, %9 : vector<128x64xf32>
    %cst_8 = arith.constant dense<0x7F800000> : vector<64xf32>
    %12 = vector.multi_reduction <minimumf>, %11, %cst_8 [0] : vector<128x64xf32> to vector<64xf32>
    %13 = vector.shape_cast %12 : vector<64xf32> to vector<1x64xf32>
    %14 = tpu.iota {dimensions = array<i32: 0>} : vector<128x1xi32>
    %15 = vector.broadcast %13 : vector<1x64xf32> to vector<128x64xf32>
    %16 = arith.cmpf ole, %11, %15 : vector<128x64xf32>
    %c128_i32 = arith.constant 128 : i32
    %17 = vector.shape_cast %14 : vector<128x1xi32> to vector<128x1xi32>
    %18 = vector.broadcast %17 : vector<128x1xi32> to vector<128x64xi32>
    %19 = vector.broadcast %c128_i32 : i32 to vector<128x64xi32>
    %20 = arith.select %16, %18, %19 : vector<128x64xi1>, vector<128x64xi32>
    %cst_9 = arith.constant dense<2147483647> : vector<64xi32>
    %21 = vector.multi_reduction <minsi>, %20, %cst_9 [0] : vector<128x64xi32> to vector<64xi32>
    %22 = vector.shape_cast %21 : vector<64xi32> to vector<1x64xi32>
    %c64_i32 = arith.constant 64 : i32
    %23 = arith.muli %arg1, %c64_i32 : i32
    %24 = tpu.iota {dimensions = array<i32: 1>} : vector<1x64xi32>
    %25 = vector.broadcast %23 : i32 to vector<1x64xi32>
    %26 = arith.addi %25, %24 : vector<1x64xi32>
    %c64_i32_10 = arith.constant 64 : i32
    %27 = vector.broadcast %c64_i32_10 : i32 to vector<1x64xi32>
    %28 = arith.cmpi slt, %26, %27 : vector<1x64xi32>
    %c128_i32_11 = arith.constant 128 : i32
    %29 = vector.broadcast %c128_i32_11 : i32 to vector<1x64xi32>
    %30 = arith.select %28, %22, %29 : vector<1x64xi1>, vector<1x64xi32>
    %31 = vector.broadcast %14 : vector<128x1xi32> to vector<128x64xi32>
    %32 = vector.broadcast %30 : vector<1x64xi32> to vector<128x64xi32>
    %33 = arith.cmpi eq, %31, %32 : vector<128x64xi32>
    %34 = arith.extui %33 : vector<128x64xi1> to vector<128x64xi32>
    %35 = arith.sitofp %34 : vector<128x64xi32> to vector<128x64xf32>
    %cst_12 = arith.constant dense<0.000000e+00> : vector<64x64xf32>
    %36 = tpu.matmul %5, %35, %cst_12 {dimension_numbers = #tpu.dot_dimension_numbers<[0], [0], [1], [1], [0, 1, 1, 1], [], []>} : vector<128x64xf32>, vector<128x64xf32>, vector<64x64xf32> -> vector<64x64xf32>
    %c0_13 = arith.constant 0 : index
    %c0_14 = arith.constant 0 : index
    %c0_15 = arith.constant 0 : index
    %37 = vector.load %arg5[%c0_13, %c0_14, %c0_15] : memref<1x64x64xf32, #tpu.memory_space<vmem>>, vector<1x64x64xf32>
    %38 = vector.shape_cast %37 : vector<1x64x64xf32> to vector<64x64xf32>
    %39 = vector.shape_cast %36 : vector<64x64xf32> to vector<1x64x64xf32>
    tpu.vector_store %arg5[%c0_13, %c0_14, %c0_15], %39 {strides = array<i32>} : memref<1x64x64xf32, #tpu.memory_space<vmem>>, vector<1x64x64xf32>,
    %c0_16 = arith.constant 0 : index
    %c0_17 = arith.constant 0 : index
    %c0_18 = arith.constant 0 : index
    %40 = vector.load %arg6[%c0_16, %c0_17, %c0_18] : memref<1x128x1xf32, #tpu.memory_space<vmem>>, vector<1x128x1xf32>
    %41 = vector.shape_cast %40 : vector<1x128x1xf32> to vector<128x1xf32>
    %cst_19 = arith.constant dense<0.000000e+00> : vector<128xf32>
    %42 = vector.multi_reduction <add>, %35, %cst_19 [1] : vector<128x64xf32> to vector<128xf32>
    %43 = vector.shape_cast %42 : vector<128xf32> to vector<128x1xf32>
    %44 = arith.addf %41, %43 : vector<128x1xf32>
    %c0_20 = arith.constant 0 : index
    %c0_21 = arith.constant 0 : index
    %c0_22 = arith.constant 0 : index
    %45 = vector.load %arg6[%c0_20, %c0_21, %c0_22] : memref<1x128x1xf32, #tpu.memory_space<vmem>>, vector<1x128x1xf32>
    %46 = vector.shape_cast %45 : vector<1x128x1xf32> to vector<128x1xf32>
    %47 = vector.shape_cast %44 : vector<128x1xf32> to vector<1x128x1xf32>
    tpu.vector_store %arg6[%c0_20, %c0_21, %c0_22], %47 {strides = array<i32>} : memref<1x128x1xf32, #tpu.memory_space<vmem>>, vector<1x128x1xf32>,
    %48 = arith.subf %36, %4 : vector<64x64xf32>
    %49 = arith.mulf %48, %48 : vector<64x64xf32>
    %cst_23 = arith.constant dense<0.000000e+00> : vector<64xf32>
    %50 = vector.multi_reduction <add>, %49, %cst_23 [0] : vector<64x64xf32> to vector<64xf32>
    %51 = vector.shape_cast %50 : vector<64xf32> to vector<1x64xf32>
    %c0_24 = arith.constant 0 : index
    %c0_25 = arith.constant 0 : index
    %c0_26 = arith.constant 0 : index
    %52 = vector.load %arg7[%c0_24, %c0_25, %c0_26] : memref<1x1x64xf32, #tpu.memory_space<vmem>>, vector<1x1x64xf32>
    %53 = vector.shape_cast %52 : vector<1x1x64xf32> to vector<1x64xf32>
    %cst_27 = arith.constant 0.000000e+00 : f32
    %54 = vector.broadcast %cst_27 : f32 to vector<1x64xf32>
    %55 = arith.select %28, %51, %54 : vector<1x64xi1>, vector<1x64xf32>
    %56 = arith.addf %53, %55 : vector<1x64xf32>
    %c0_28 = arith.constant 0 : index
    %c0_29 = arith.constant 0 : index
    %c0_30 = arith.constant 0 : index
    %57 = vector.load %arg7[%c0_28, %c0_29, %c0_30] : memref<1x1x64xf32, #tpu.memory_space<vmem>>, vector<1x1x64xf32>
    %58 = vector.shape_cast %57 : vector<1x1x64xf32> to vector<1x64xf32>
    %59 = vector.shape_cast %56 : vector<1x64xf32> to vector<1x1x64xf32>
    tpu.vector_store %arg7[%c0_28, %c0_29, %c0_30], %59 {strides = array<i32>} : memref<1x1x64xf32, #tpu.memory_space<vmem>>, vector<1x1x64xf32>,
    return
  }
  func.func @transform_0(%arg0: i32, %arg1: i32) -> (i32, i32, i32) {
    %c0_i32 = arith.constant 0 : i32
    %c0_i32_0 = arith.constant 0 : i32
    return %arg0, %c0_i32, %arg1 : i32, i32, i32
  }
  func.func @transform_1(%arg0: i32, %arg1: i32) -> (i32, i32) {
    %c0_i32 = arith.constant 0 : i32
    %c0_i32_0 = arith.constant 0 : i32
    %c0_i32_1 = arith.constant 0 : i32
    return %c0_i32, %c0_i32_0 : i32, i32
  }
  func.func @transform_2(%arg0: i32, %arg1: i32) -> (i32, i32) {
    %c0_i32 = arith.constant 0 : i32
    %c0_i32_0 = arith.constant 0 : i32
    %c0_i32_1 = arith.constant 0 : i32
    return %c0_i32, %c0_i32_0 : i32, i32
  }
  func.func @transform_3(%arg0: i32, %arg1: i32) -> (i32, i32, i32) {
    %c0_i32 = arith.constant 0 : i32
    %c0_i32_0 = arith.constant 0 : i32
    return %arg0, %c0_i32, %arg1 : i32, i32, i32
  }
  func.func @transform_4(%arg0: i32, %arg1: i32) -> (i32, i32, i32) {
    %c0_i32 = arith.constant 0 : i32
    %c0_i32_0 = arith.constant 0 : i32
    %c0_i32_1 = arith.constant 0 : i32
    return %arg0, %c0_i32, %c0_i32_0 : i32, i32, i32
  }
  func.func @transform_5(%arg0: i32, %arg1: i32) -> (i32, i32, i32) {
    %c0_i32 = arith.constant 0 : i32
    %c0_i32_0 = arith.constant 0 : i32
    %c0_i32_1 = arith.constant 0 : i32
    return %arg0, %c0_i32, %c0_i32_0 : i32, i32, i32
  }
}

</mosaic_0001>

<llo_original>
// kernel: tpu_custom_call.1
$region0: #{tpu_custom_call.1}
  #allocation0 [shape = 'u32[]', space=smem, size = 0x4, offset = 0x4, fixed_abs, tag = 'smem constant byte address 0x4 - core index']
  #allocation1 [shape = 'u32[144,128]{1,0:T(1,128)}', space=vmem, size = 0x12000, scoped, tag = 'internal scratch']
  %s0 = inlined_call_operand.vmem [shape: f32[2,64,64], index: 0, kind: input, shape index: {}]
  %s1 = inlined_call_operand.vmem [shape: f32[128,64], index: 1, kind: input, shape index: {}]
  %s2 = inlined_call_operand.vmem [shape: f32[128,1], index: 2, kind: input, shape index: {}]
  %s3 = inlined_call_operand.hbm [shape: f32[2,64,64], index: 3, kind: output, shape index: {0}]
  %s4 = inlined_call_operand.vmem [shape: f32[2,128,1], index: 4, kind: output, shape index: {1}]
  %s5 = inlined_call_operand.hbm [shape: f32[2,1,64], index: 5, kind: output, shape index: {2}]
  %6 = xla_tuple %s3, %s4, %s5
  %s7 = sld [smem:[#allocation0]]
  $region65: #{tpu_custom_call.1} parent=0
    _
  %s9 = ssub.s32 1, %s7
  %s10 = scalar_select 0, %s9, %s7
  $region1: #{tpu_custom_call.1} parent=0
    #allocation2 [shape = 'u8[65536]{0}', space=vmem, size = 0x10000, scoped, tag = 'output window, operand 0']
    #allocation3 [shape = 's32[2]{0}', space=sflag, size = 0x8, scoped, tag = 'scoped memory for tpu_custom_call.1']
    #allocation4 [shape = 'u8[1024]{0}', space=vmem, size = 0x400, scoped, tag = 'output window, operand 2']
    #allocation5 [shape = 's32[2]{0}', space=sflag, size = 0x8, scoped, tag = 'scoped memory for tpu_custom_call.1']
    %11 = vsyncpa [#allocation3], 0
    %s12 = scalar_lea.sflag [#allocation3], 1
    %13 = vsyncpa %s12, 0
    %14 = vsyncpa [#allocation5], 0
    %s15 = scalar_lea.sflag [#allocation5], 1
    %16 = vsyncpa %s15, 0
    loop: start=0, step=1, limit=4
    $region2: #{tpu_custom_call.1} parent=1 // loop_pre_header
      _
    $region3: #{tpu_custom_call.1} parent=1 // loop_header
      %s18 = sphi 0, %s22
      %p19 = scmp.ge.s32.totalorder %s18, 4
      %s25 = sphi 0, %s37
      %s26 = sphi 0, %s33
      %s27 = sphi 0, %s25
      %s28 = sphi 0, %s26
      %s29 = sphi 0, %s27
      %s30 = sphi 0, %s28
      %s42 = sphi 0, %s44
      %s45 = sphi 0, %s42
      %s46 = sphi 0, %s45
      %s62 = sphi 0, %s46
      %s66 = sphi 0, %s66
      %s68 = sphi 0, %s66
      %s69 = sphi 0, %s68
      %s83 = sphi 0, %s69
      %s87 = sphi 0, %s87
      %s89 = sphi 0, %s87
      %s90 = sphi 0, %s89
      %s104 = sphi 0, %s90
      %s112 = sphi 0, %s114
      %s115 = sphi 0, %s112
      %s116 = sphi 0, %s115
      %s132 = sphi 0, %s116
      %s138 = sphi 0, %s140
      %s141 = sphi 0, %s138
      %s142 = sphi 0, %s141
      %s158 = sphi 0, %s142
      %s164 = sphi 0, %s166
      %s167 = sphi 0, %s164
      %s168 = sphi 0, %s167
      %s184 = sphi 0, %s168
    $region4: #{tpu_custom_call.1} parent=1 // loop_header_branch
      %21 = sbr.rel (%p19) target = $region8
    $region5: #{tpu_custom_call.1} parent=1 // loop_body
      %s23 = ssub.s32 %s18, 1
      %s24 = ssub.s32 %s18, 2
      %s31 = sadd.s32 1, %s26
      %p32 = scmp.ge.s32.totalorder %s31, 1
      %s33 = scalar_select %p32, 0, %s31
      %s34 = sadd.s32 1, %s25
      %s35 = scalar_select %p32, %s34, %s25
      %p36 = scmp.ge.s32.totalorder %s35, 2
      %s37 = scalar_select %p36, 0, %s35
      %s38 = ssub.s32 %s25, %s37
      %s39 = ssub.s32 %s26, %s33
      %s40 = sor.u32 %s38, %s39
      %p41 = scmp.eq.s32.totalorder %s40, 0
      %s43 = sadd.s32 %s42, 1
      %s44 = scalar_select %p41, %s42, %s43
      %p47 = pneg %p41
      %p48 = scmp.eq.s32.totalorder %s18, 1
      %p49 = por %p47, %p48
      %p50 = scmp.ne.s32.totalorder %s42, %s45
      %p51 = scmp.eq.s32.totalorder %s18, 0
      %p52 = por %p50, %p51
      %p53 = scmp.ne.s32.totalorder %s42, %s45
      %p54 = scmp.eq.s32.totalorder %s23, 1
      %p55 = por %p53, %p54
      %p56 = scmp.ne.s32.totalorder %s45, %s46
      %p57 = scmp.eq.s32.totalorder %s23, 0
      %p58 = por %p56, %p57
      %p59 = scmp.ne.s32.totalorder %s45, %s46
      %p60 = scmp.eq.s32.totalorder %s24, 1
      %p61 = por %p59, %p60
      %p63 = scmp.ne.s32.totalorder %s46, %s62
      %p64 = scmp.eq.s32.totalorder %s24, 0
      %p65 = por %p63, %p64
      %s67 = sadd.s32 %s66, 1
      %p70 = scmp.eq.s32.totalorder %s18, 1
      %p71 = scmp.ne.s32.totalorder %s66, %s68
      %p72 = scmp.eq.s32.totalorder %s18, 0
      %p73 = por %p71, %p72
      %p74 = scmp.ne.s32.totalorder %s66, %s68
      %p75 = scmp.eq.s32.totalorder %s23, 1
      %p76 = por %p74, %p75
      %p77 = scmp.ne.s32.totalorder %s68, %s69
      %p78 = scmp.eq.s32.totalorder %s23, 0
      %p79 = por %p77, %p78
      %p80 = scmp.ne.s32.totalorder %s68, %s69
      %p81 = scmp.eq.s32.totalorder %s24, 1
      %p82 = por %p80, %p81
      %p84 = scmp.ne.s32.totalorder %s69, %s83
      %p85 = scmp.eq.s32.totalorder %s24, 0
      %p86 = por %p84, %p85
      %s88 = sadd.s32 %s87, 1
      %p91 = scmp.eq.s32.totalorder %s18, 1
      %p92 = scmp.ne.s32.totalorder %s87, %s89
      %p93 = scmp.eq.s32.totalorder %s18, 0
      %p94 = por %p92, %p93
      %p95 = scmp.ne.s32.totalorder %s87, %s89
      %p96 = scmp.eq.s32.totalorder %s23, 1
      %p97 = por %p95, %p96
      %p98 = scmp.ne.s32.totalorder %s89, %s90
      %p99 = scmp.eq.s32.totalorder %s23, 0
      %p100 = por %p98, %p99
      %p101 = scmp.ne.s32.totalorder %s89, %s90
      %p102 = scmp.eq.s32.totalorder %s24, 1
      %p103 = por %p101, %p102
      %p105 = scmp.ne.s32.totalorder %s90, %s104
      %p106 = scmp.eq.s32.totalorder %s24, 0
      %p107 = por %p105, %p106
      %s108 = ssub.s32 %s25, %s37
      %s109 = ssub.s32 %s26, %s33
      %s110 = sor.u32 %s108, %s109
      %p111 = scmp.eq.s32.totalorder %s110, 0
      %s113 = sadd.s32 %s112, 1
      %s114 = scalar_select %p111, %s112, %s113
      %p117 = pneg %p111
      %p118 = scmp.eq.s32.totalorder %s18, 1
      %p119 = por %p117, %p118
      %p120 = scmp.ne.s32.totalorder %s112, %s115
      %p121 = scmp.eq.s32.totalorder %s18, 0
      %p122 = por %p120, %p121
      %p123 = scmp.ne.s32.totalorder %s112, %s115
      %p124 = scmp.eq.s32.totalorder %s23, 1
      %p125 = por %p123, %p124
      %p126 = scmp.ne.s32.totalorder %s115, %s116
      %p127 = scmp.eq.s32.totalorder %s23, 0
      %p128 = por %p126, %p127
      %p129 = scmp.ne.s32.totalorder %s115, %s116
      %p130 = scmp.eq.s32.totalorder %s24, 1
      %p131 = por %p129, %p130
      %p133 = scmp.ne.s32.totalorder %s116, %s132
      %p134 = scmp.eq.s32.totalorder %s24, 0
      %p135 = por %p133, %p134
      %s136 = ssub.s32 %s25, %s37
      %p137 = scmp.eq.s32.totalorder %s136, 0
      %s139 = sadd.s32 %s138, 1
      %s140 = scalar_select %p137, %s138, %s139
      %p143 = pneg %p137
      %p144 = scmp.eq.s32.totalorder %s18, 1
      %p145 = por %p143, %p144
      %p146 = scmp.ne.s32.totalorder %s138, %s141
      %p147 = scmp.eq.s32.totalorder %s18, 0
      %p148 = por %p146, %p147
      %p149 = scmp.ne.s32.totalorder %s138, %s141
      %p150 = scmp.eq.s32.totalorder %s23, 1
      %p151 = por %p149, %p150
      %p152 = scmp.ne.s32.totalorder %s141, %s142
      %p153 = scmp.eq.s32.totalorder %s23, 0
      %p154 = por %p152, %p153
      %p155 = scmp.ne.s32.totalorder %s141, %s142
      %p156 = scmp.eq.s32.totalorder %s24, 1
      %p157 = por %p155, %p156
      %p159 = scmp.ne.s32.totalorder %s142, %s158
      %p160 = scmp.eq.s32.totalorder %s24, 0
      %p161 = por %p159, %p160
      %s162 = ssub.s32 %s25, %s37
      %p163 = scmp.eq.s32.totalorder %s162, 0
      %s165 = sadd.s32 %s164, 1
      %s166 = scalar_select %p163, %s164, %s165
      %p169 = pneg %p163
      %p170 = scmp.eq.s32.totalorder %s18, 1
      %p171 = por %p169, %p170
      %p172 = scmp.ne.s32.totalorder %s164, %s167
      %p173 = scmp.eq.s32.totalorder %s18, 0
      %p174 = por %p172, %p173
      %p175 = scmp.ne.s32.totalorder %s164, %s167
      %p176 = scmp.eq.s32.totalorder %s23, 1
      %p177 = por %p175, %p176
      %p178 = scmp.ne.s32.totalorder %s167, %s168
      %p179 = scmp.eq.s32.totalorder %s23, 0
      %p180 = por %p178, %p179
      %p181 = scmp.ne.s32.totalorder %s167, %s168
      %p182 = scmp.eq.s32.totalorder %s24, 1
      %p183 = por %p181, %p182
      %p185 = scmp.ne.s32.totalorder %s168, %s184
      %p186 = scmp.eq.s32.totalorder %s24, 0
      %p187 = por %p185, %p186
      %p188 = scmp.le.s32.totalorder 1, %s18
      %p189 = scmp.lt.s32.totalorder %s18, 3
      %p190 = pnand %p188, %p189
      %p191 = pneg %p190
      // Predicated region
      $region9: #{tpu_custom_call.1} parent=5 // pred_check
        _
      $region10: #{tpu_custom_call.1} parent=5 // pred_check_branch
        %193 = sbr.rel (%p190) target = $region12
      $region11: #{tpu_custom_call.1} parent=5 // pred_region
        %s194 = ssub.s32 %s18, 1
        // Predicated region
        $region13: #{tpu_custom_call.1} parent=11 // pred_check
          %p195 = pneg %p79
        $region14: #{tpu_custom_call.1} parent=11 // pred_check_branch
          %197 = sbr.rel (%p195) target = $region16
        $region15: #{tpu_custom_call.1} parent=11 // pred_region
          _
        $region16: #{tpu_custom_call.1} parent=11 // pred_fallthru
          _
        // Predicated region
        $region17: #{tpu_custom_call.1} parent=11 // pred_check
          %p198 = pneg %p100
        $region18: #{tpu_custom_call.1} parent=11 // pred_check_branch
          %200 = sbr.rel (%p198) target = $region20
        $region19: #{tpu_custom_call.1} parent=11 // pred_region
          _
        $region20: #{tpu_custom_call.1} parent=11 // pred_fallthru
          _
      $region12: #{tpu_custom_call.1} parent=5 // pred_fallthru
        _
      %p201 = scmp.lt.s32.totalorder %s18, 2
      // Predicated region
      $region21: #{tpu_custom_call.1} parent=5 // pred_check
        %p202 = pneg %p201
      $region22: #{tpu_custom_call.1} parent=5 // pred_check_branch
        %204 = sbr.rel (%p202) target = $region24
      $region23: #{tpu_custom_call.1} parent=5 // pred_region
        // Predicated region
        $region25: #{tpu_custom_call.1} parent=23 // pred_check
          %p205 = pneg %p52
        $region26: #{tpu_custom_call.1} parent=23 // pred_check_branch
          %207 = sbr.rel (%p205) target = $region28
        $region27: #{tpu_custom_call.1} parent=23 // pred_region
          %p208 = scmp.lt.s32.totalorder %s25, 1
          %s209 = scalar_select %p208, %s25, 1
          %p210 = scmp.lt.s32.totalorder %s26, 0
          %s211 = scalar_select %p210, %s26, 0
          %s212 = smul.addr %s209, 8
          %s213 = sadd.s32 %s211, %s212
          %s214 = smul.addr %s213, 8
          %s215 = scalar_lea.vmem %s0, %s214
        $region28: #{tpu_custom_call.1} parent=23 // pred_fallthru
          _
      $region24: #{tpu_custom_call.1} parent=5 // pred_fallthru
        _
      %p216 = scmp.le.s32.totalorder 1, %s18
      %p217 = scmp.lt.s32.totalorder %s18, 3
      %p218 = pnand %p216, %p217
      %p219 = pneg %p218
      // Predicated region
      $region29: #{tpu_custom_call.1} parent=5 // pred_check
        _
      $region30: #{tpu_custom_call.1} parent=5 // pred_check_branch
        %221 = sbr.rel (%p218) target = $region32
      $region31: #{tpu_custom_call.1} parent=5 // pred_region
        %s222 = ssub.s32 %s18, 1
        %p223 = scmp.lt.s32.totalorder %s27, 1
        %s224 = scalar_select %p223, %s27, 1
        %p225 = scmp.lt.s32.totalorder %s28, 0
        %s226 = scalar_select %p225, %s28, 0
        %s227 = smul.addr %s224, 8
        %s228 = sadd.s32 %s226, %s227
        %s229 = smul.addr %s228, 8
        %s230 = scalar_lea.vmem %s0, %s229
        %p231 = pneg %p58
        %p232 = pneg %p55
        %p233 = pneg %p79
        %p234 = pneg %p76
        %p235 = pneg %p100
        %p236 = pneg %p97
        %p237 = pneg %p128
        %p238 = pneg %p125
        %s239 = sand.u32 %s115, 1
        %s240 = scalar_lea.sflag [#allocation3], %s239
        %s241 = sand.u32 %s115, 1
        %s242 = smul.addr %s241, 64
        %s243 = scalar_lea.vmem [#allocation2], %s242
        %p244 = pneg %p154
        %p245 = pneg %p151
        %p246 = scmp.lt.s32.totalorder %s27, 1
        %s247 = scalar_select %p246, %s27, 1
        %s248 = smul.addr %s247, 16
        %s249 = smul.addr %s248, 8
        %s250 = scalar_lea.vmem %s4, %s249
        %p251 = pneg %p180
        %p252 = pneg %p177
        %s253 = sand.u32 %s167, 1
        %s254 = scalar_lea.sflag [#allocation5], %s253
        %s255 = sand.u32 %s167, 1
        %s256 = scalar_lea.vmem [#allocation4], %s255
        %p257 = scmp.lt.s32.totalorder %s27, 1
        %s258 = scalar_select %p257, %s27, 1
        %p259 = scmp.lt.s32.totalorder %s28, 0
        %s260 = scalar_select %p259, %s28, 0
        %s261 = smul.addr %s258, 8
        %s262 = sadd.s32 %s260, %s261
        %s263 = smul.addr %s262, 8
        %s264 = scalar_lea.vmem %s0, %s263
        %p265 = scmp.lt.s32.totalorder %s27, 1
        %s266 = scalar_select %p265, %s27, 1
        %s267 = smul.addr %s266, 16
        %s268 = smul.addr %s267, 8
        %s269 = scalar_lea.vmem %s4, %s268
        %p270 = scmp.eq.s32.totalorder %s28, 0
        // Predicated region
        $region33: #{tpu_custom_call.1} parent=31 // pred_check
          %p271 = pneg %p270
        $region34: #{tpu_custom_call.1} parent=31 // pred_check_branch
          %273 = sbr.rel (%p271) target = $region36
        $region35: #{tpu_custom_call.1} parent=31 // pred_region
          %vm274 = vcmask 7168
          %275 = vst.msk [vmem:[%s269] sm:$0xff] %vm274, 0.0
          %276 = vst.msk [vmem:[%s269 + $0x8] sm:$0xff] %vm274, 0.0
          %277 = vst.msk [vmem:[%s269 + $0x10] sm:$0xff] %vm274, 0.0
          %278 = vst.msk [vmem:[%s269 + $0x18] sm:$0xff] %vm274, 0.0
          %279 = vst.msk [vmem:[%s269 + $0x20] sm:$0xff] %vm274, 0.0
          %280 = vst.msk [vmem:[%s269 + $0x28] sm:$0xff] %vm274, 0.0
          %281 = vst.msk [vmem:[%s269 + $0x30] sm:$0xff] %vm274, 0.0
          %282 = vst.msk [vmem:[%s269 + $0x38] sm:$0xff] %vm274, 0.0
          %283 = vst.msk [vmem:[%s269 + $0x40] sm:$0xff] %vm274, 0.0
          %284 = vst.msk [vmem:[%s269 + $0x48] sm:$0xff] %vm274, 0.0
          %285 = vst.msk [vmem:[%s269 + $0x50] sm:$0xff] %vm274, 0.0
          %286 = vst.msk [vmem:[%s269 + $0x58] sm:$0xff] %vm274, 0.0
          %287 = vst.msk [vmem:[%s269 + $0x60] sm:$0xff] %vm274, 0.0
          %288 = vst.msk [vmem:[%s269 + $0x68] sm:$0xff] %vm274, 0.0
          %289 = vst.msk [vmem:[%s269 + $0x70] sm:$0xff] %vm274, 0.0
          %290 = vst.msk [vmem:[%s269 + $0x78] sm:$0xff] %vm274, 0.0
          %vm291 = vcmask 516096
          %292 = vst.msk [vmem:[%s256] sm:$0x1] %vm291, 0.0
        $region36: #{tpu_custom_call.1} parent=31 // pred_fallthru
          _
        %v293 = vld [vmem:[%s264] sm:$0xff]
        %v294 = vld [vmem:[%s264 + $0x8] sm:$0xff]
        %v295 = vld [vmem:[%s264 + $0x10] sm:$0xff]
        %v296 = vld [vmem:[%s264 + $0x18] sm:$0xff]
        %v297 = vld [vmem:[%s264 + $0x20] sm:$0xff]
        %v298 = vld [vmem:[%s264 + $0x28] sm:$0xff]
        %v299 = vld [vmem:[%s264 + $0x30] sm:$0xff]
        %v300 = vld [vmem:[%s264 + $0x38] sm:$0xff]
        %v301 = vld [vmem:[%s1] sm:$0xff]
        %v302 = vld [vmem:[%s1 + $0x8] sm:$0xff]
        %v303 = vld [vmem:[%s1 + $0x10] sm:$0xff]
        %v304 = vld [vmem:[%s1 + $0x18] sm:$0xff]
        %v305 = vld [vmem:[%s1 + $0x20] sm:$0xff]
        %v306 = vld [vmem:[%s1 + $0x28] sm:$0xff]
        %v307 = vld [vmem:[%s1 + $0x30] sm:$0xff]
        %v308 = vld [vmem:[%s1 + $0x38] sm:$0xff]
        %v309 = vld [vmem:[%s1 + $0x40] sm:$0xff]
        %v310 = vld [vmem:[%s1 + $0x48] sm:$0xff]
        %v311 = vld [vmem:[%s1 + $0x50] sm:$0xff]
        %v312 = vld [vmem:[%s1 + $0x58] sm:$0xff]
        %v313 = vld [vmem:[%s1 + $0x60] sm:$0xff]
        %v314 = vld [vmem:[%s1 + $0x68] sm:$0xff]
        %v315 = vld [vmem:[%s1 + $0x70] sm:$0xff]
        %v316 = vld [vmem:[%s1 + $0x78] sm:$0xff]
        %v317 = vld [vmem:[%s2] sm:$0xff]
        %v318 = vld [vmem:[%s2 + $0x8] sm:$0xff]
        %v319 = vld [vmem:[%s2 + $0x10] sm:$0xff]
        %v320 = vld [vmem:[%s2 + $0x18] sm:$0xff]
        %v321 = vld [vmem:[%s2 + $0x20] sm:$0xff]
        %v322 = vld [vmem:[%s2 + $0x28] sm:$0xff]
        %v323 = vld [vmem:[%s2 + $0x30] sm:$0xff]
        %v324 = vld [vmem:[%s2 + $0x38] sm:$0xff]
        %v325 = vld [vmem:[%s2 + $0x40] sm:$0xff]
        %v326 = vld [vmem:[%s2 + $0x48] sm:$0xff]
        %v327 = vld [vmem:[%s2 + $0x50] sm:$0xff]
        %v328 = vld [vmem:[%s2 + $0x58] sm:$0xff]
        %v329 = vld [vmem:[%s2 + $0x60] sm:$0xff]
        %v330 = vld [vmem:[%s2 + $0x68] sm:$0xff]
        %v331 = vld [vmem:[%s2 + $0x70] sm:$0xff]
        %v332 = vld [vmem:[%s2 + $0x78] sm:$0xff]
        %vm333 = vcmask 523264
        %v335 = vsel %vm333, %v301, 0
        %v338 = vsel %vm333, %v302, 0
        %v341 = vsel %vm333, %v303, 0
        %v344 = vsel %vm333, %v304, 0
        %v347 = vsel %vm333, %v305, 0
        %v350 = vsel %vm333, %v306, 0
        %v353 = vsel %vm333, %v307, 0
        %v356 = vsel %vm333, %v308, 0
        %v359 = vsel %vm333, %v309, 0
        %v362 = vsel %vm333, %v310, 0
        %v365 = vsel %vm333, %v311, 0
        %v368 = vsel %vm333, %v312, 0
        %v371 = vsel %vm333, %v313, 0
        %v374 = vsel %vm333, %v314, 0
        %v377 = vsel %vm333, %v315, 0
        %v380 = vsel %vm333, %v316, 0
        %382 = vmatprep.subr.mxu0 0.0
        %383 = vmatpush1.msra.mxu0 %v293
        %384 = vmatprep.subr.mxu0 0.0
        %385 = vmatpush1.msra.mxu0 %v294
        %386 = vmatprep.subr.mxu0 0.0
        %387 = vmatpush1.msra.mxu0 %v295
        %388 = vmatprep.subr.mxu0 0.0
        %389 = vmatpush1.msra.mxu0 %v296
        %390 = vmatprep.subr.mxu0 0.0
        %391 = vmatpush1.msra.mxu0 %v297
        %392 = vmatprep.subr.mxu0 0.0
        %393 = vmatpush1.msra.mxu0 %v298
        %394 = vmatprep.subr.mxu0 0.0
        %395 = vmatpush1.msra.mxu0 %v299
        %396 = vmatprep.subr.mxu0 0.0
        %397 = vmatpush1.msra.mxu0 %v300
        %398 = vmatprep.subr.mxu0 0.0
        %399 = vmatpush1.msra.mxu0 0.0
        %400 = vmatprep.subr.mxu0 0.0
        %401 = vmatpush1.msra.mxu0 0.0
        %402 = vmatprep.subr.mxu0 0.0
        %403 = vmatpush1.msra.mxu0 0.0
        %404 = vmatprep.subr.mxu0 0.0
        %405 = vmatpush1.msra.mxu0 0.0
        %406 = vmatprep.subr.mxu0 0.0
        %407 = vmatpush1.msra.mxu0 0.0
        %408 = vmatprep.subr.mxu0 0.0
        %409 = vmatpush1.msra.mxu0 0.0
        %410 = vmatprep.subr.mxu0 0.0
        %411 = vmatpush1.msra.mxu0 0.0
        %412 = vmatprep.subr.mxu0 0.0
        %413 = vmatpush1.msra.mxu0 0.0
        %414 = vmatprep.subr.mxu0 0.0
        %415 = vmatpush1.msra.mxu0 0.0
        %416 = vmatprep.subr.mxu0 0.0
        %417 = vmatpush1.msra.mxu0 0.0
        %418 = vmatprep.subr.mxu0 0.0
        %419 = vmatpush1.msra.mxu0 0.0
        %420 = vmatprep.subr.mxu0 0.0
        %421 = vmatpush1.msra.mxu0 0.0
        %422 = vmatprep.subr.mxu0 0.0
        %423 = vmatpush1.msra.mxu0 0.0
        %424 = vmatprep.subr.mxu0 0.0
        %425 = vmatpush1.msra.mxu0 0.0
        %426 = vmatprep.subr.mxu0 0.0
        %427 = vmatpush1.msra.mxu0 0.0
        %428 = vmatprep.subr.mxu0 0.0
        %429 = vmatpush1.msra.mxu0 0.0
        %430 = vmatprep.subr.mxu0 0.0
        %431 = vmatpush1.msra.mxu0 0.0
        %432 = vmatprep.subr.mxu0 0.0
        %433 = vmatpush1.msra.mxu0 0.0
        %434 = vmatprep.subr.mxu0 0.0
        %435 = vmatpush1.msra.mxu0 0.0
        %436 = vmatprep.subr.mxu0 0.0
        %437 = vmatpush1.msra.mxu0 0.0
        %438 = vmatprep.subr.mxu0 0.0
        %439 = vmatpush1.msra.mxu0 0.0
        %440 = vmatprep.subr.mxu0 0.0
        %441 = vmatpush1.msra.mxu0 0.0
        %442 = vmatprep.subr.mxu0 0.0
        %443 = vmatpush1.msra.mxu0 0.0
        %444 = vmatprep.subr.mxu0 0.0
        %445 = vmatpush1.msra.mxu0 0.0
        %446 = vmatprep.mubr.f32.mxu0 0.0
        %447 = vmatmul.mubr.f32.gmra.mrb[0].mxu0 %v335
        %v448 = vpop.f32.mrb[0].mxu0
        %v449 = vadd.f32 0.0, %v448
        %v450 = vpop.f32.mrb[0].mxu0
        %451 = vmatprep.mubr.f32.mxu0 0.0
        %452 = vmatmul.mubr.f32.gmra.mrb[0].mxu0 %v338
        %v453 = vpop.f32.mrb[0].mxu0
        %v454 = vadd.f32 0.0, %v453
        %v455 = vpop.f32.mrb[0].mxu0
        %456 = vmatprep.mubr.f32.mxu0 0.0
        %457 = vmatmul.mubr.f32.gmra.mrb[0].mxu0 %v341
        %v458 = vpop.f32.mrb[0].mxu0
        %v459 = vadd.f32 0.0, %v458
        %v460 = vpop.f32.mrb[0].mxu0
        %461 = vmatprep.mubr.f32.mxu0 0.0
        %462 = vmatmul.mubr.f32.gmra.mrb[0].mxu0 %v344
        %v463 = vpop.f32.mrb[0].mxu0
        %v464 = vadd.f32 0.0, %v463
        %v465 = vpop.f32.mrb[0].mxu0
        %466 = vmatprep.mubr.f32.mxu0 0.0
        %467 = vmatmul.mubr.f32.gmra.mrb[0].mxu0 %v347
        %v468 = vpop.f32.mrb[0].mxu0
        %v469 = vadd.f32 0.0, %v468
        %v470 = vpop.f32.mrb[0].mxu0
        %471 = vmatprep.mubr.f32.mxu0 0.0
        %472 = vmatmul.mubr.f32.gmra.mrb[0].mxu0 %v350
        %v473 = vpop.f32.mrb[0].mxu0
        %v474 = vadd.f32 0.0, %v473
        %v475 = vpop.f32.mrb[0].mxu0
        %476 = vmatprep.mubr.f32.mxu0 0.0
        %477 = vmatmul.mubr.f32.gmra.mrb[0].mxu0 %v353
        %v478 = vpop.f32.mrb[0].mxu0
        %v479 = vadd.f32 0.0, %v478
        %v480 = vpop.f32.mrb[0].mxu0
        %481 = vmatprep.mubr.f32.mxu0 0.0
        %482 = vmatmul.mubr.f32.gmra.mrb[0].mxu0 %v356
        %v483 = vpop.f32.mrb[0].mxu0
        %v484 = vadd.f32 0.0, %v483
        %v485 = vpop.f32.mrb[0].mxu0
        %486 = vmatprep.mubr.f32.mxu0 0.0
        %487 = vmatmul.mubr.f32.gmra.mrb[0].mxu0 %v359
        %v488 = vpop.f32.mrb[0].mxu0
        %v489 = vadd.f32 0.0, %v488
        %v490 = vpop.f32.mrb[0].mxu0
        %491 = vmatprep.mubr.f32.mxu0 0.0
        %492 = vmatmul.mubr.f32.gmra.mrb[0].mxu0 %v362
        %v493 = vpop.f32.mrb[0].mxu0
        %v494 = vadd.f32 0.0, %v493
        %v495 = vpop.f32.mrb[0].mxu0
        %496 = vmatprep.mubr.f32.mxu0 0.0
        %497 = vmatmul.mubr.f32.gmra.mrb[0].mxu0 %v365
        %v498 = vpop.f32.mrb[0].mxu0
        %v499 = vadd.f32 0.0, %v498
        %v500 = vpop.f32.mrb[0].mxu0
        %501 = vmatprep.mubr.f32.mxu0 0.0
        %502 = vmatmul.mubr.f32.gmra.mrb[0].mxu0 %v368
        %v503 = vpop.f32.mrb[0].mxu0
        %v504 = vadd.f32 0.0, %v503
        %v505 = vpop.f32.mrb[0].mxu0
        %506 = vmatprep.mubr.f32.mxu0 0.0
        %507 = vmatmul.mubr.f32.gmra.mrb[0].mxu0 %v371
        %v508 = vpop.f32.mrb[0].mxu0
        %v509 = vadd.f32 0.0, %v508
        %v510 = vpop.f32.mrb[0].mxu0
        %511 = vmatprep.mubr.f32.mxu0 0.0
        %512 = vmatmul.mubr.f32.gmra.mrb[0].mxu0 %v374
        %v513 = vpop.f32.mrb[0].mxu0
        %v514 = vadd.f32 0.0, %v513
        %v515 = vpop.f32.mrb[0].mxu0
        %516 = vmatprep.mubr.f32.mxu0 0.0
        %517 = vmatmul.mubr.f32.gmra.mrb[0].mxu0 %v377
        %v518 = vpop.f32.mrb[0].mxu0
        %v519 = vadd.f32 0.0, %v518
        %v520 = vpop.f32.mrb[0].mxu0
        %521 = vmatprep.mubr.f32.mxu0 0.0
        %522 = vmatmul.mubr.f32.gmra.mrb[0].mxu0 %v380
        %v523 = vpop.f32.mrb[0].mxu0
        %v524 = vadd.f32 0.0, %v523
        %v525 = vpop.f32.mrb[0].mxu0
        %526 = vdwg.mxu0
        %v527 = vmul.f32 %v449, 2.0
        %v528 = vmul.f32 %v454, 2.0
        %v529 = vmul.f32 %v459, 2.0
        %v530 = vmul.f32 %v464, 2.0
        %v531 = vmul.f32 %v469, 2.0
        %v532 = vmul.f32 %v474, 2.0
        %v533 = vmul.f32 %v479, 2.0
        %v534 = vmul.f32 %v484, 2.0
        %v535 = vmul.f32 %v489, 2.0
        %v536 = vmul.f32 %v494, 2.0
        %v537 = vmul.f32 %v499, 2.0
        %v538 = vmul.f32 %v504, 2.0
        %v539 = vmul.f32 %v509, 2.0
        %v540 = vmul.f32 %v514, 2.0
        %v541 = vmul.f32 %v519, 2.0
        %v542 = vmul.f32 %v524, 2.0
        %544 = vset.pattern.permute.xlu0 0
        %545 = vperm.xlu0 %544, %v317
        %v546 = vpop.permute.xlu0 %545
        %549 = vset.pattern.permute.xlu0 0
        %550 = vperm.xlu0 %549, %v318
        %v551 = vpop.permute.xlu0 %550
        %554 = vset.pattern.permute.xlu0 0
        %555 = vperm.xlu0 %554, %v319
        %v556 = vpop.permute.xlu0 %555
        %559 = vset.pattern.permute.xlu0 0
        %560 = vperm.xlu0 %559, %v320
        %v561 = vpop.permute.xlu0 %560
        %564 = vset.pattern.permute.xlu0 0
        %565 = vperm.xlu0 %564, %v321
        %v566 = vpop.permute.xlu0 %565
        %569 = vset.pattern.permute.xlu0 0
        %570 = vperm.xlu0 %569, %v322
        %v571 = vpop.permute.xlu0 %570
        %574 = vset.pattern.permute.xlu0 0
        %575 = vperm.xlu0 %574, %v323
        %v576 = vpop.permute.xlu0 %575
        %579 = vset.pattern.permute.xlu0 0
        %580 = vperm.xlu0 %579, %v324
        %v581 = vpop.permute.xlu0 %580
        %584 = vset.pattern.permute.xlu0 0
        %585 = vperm.xlu0 %584, %v325
        %v586 = vpop.permute.xlu0 %585
        %589 = vset.pattern.permute.xlu0 0
        %590 = vperm.xlu0 %589, %v326
        %v591 = vpop.permute.xlu0 %590
        %594 = vset.pattern.permute.xlu0 0
        %595 = vperm.xlu0 %594, %v327
        %v596 = vpop.permute.xlu0 %595
        %599 = vset.pattern.permute.xlu0 0
        %600 = vperm.xlu0 %599, %v328
        %v601 = vpop.permute.xlu0 %600
        %604 = vset.pattern.permute.xlu0 0
        %605 = vperm.xlu0 %604, %v329
        %v606 = vpop.permute.xlu0 %605
        %609 = vset.pattern.permute.xlu0 0
        %610 = vperm.xlu0 %609, %v330
        %v611 = vpop.permute.xlu0 %610
        %614 = vset.pattern.permute.xlu0 0
        %615 = vperm.xlu0 %614, %v331
        %v616 = vpop.permute.xlu0 %615
        %619 = vset.pattern.permute.xlu0 0
        %620 = vperm.xlu0 %619, %v332
        %v621 = vpop.permute.xlu0 %620
        %v623 = vsub.f32 %v546, %v527
        %v624 = vsub.f32 %v551, %v528
        %v625 = vsub.f32 %v556, %v529
        %v626 = vsub.f32 %v561, %v530
        %v627 = vsub.f32 %v566, %v531
        %v628 = vsub.f32 %v571, %v532
        %v629 = vsub.f32 %v576, %v533
        %v630 = vsub.f32 %v581, %v534
        %v631 = vsub.f32 %v586, %v535
        %v632 = vsub.f32 %v591, %v536
        %v633 = vsub.f32 %v596, %v537
        %v634 = vsub.f32 %v601, %v538
        %v635 = vsub.f32 %v606, %v539
        %v636 = vsub.f32 %v611, %v540
        %v637 = vsub.f32 %v616, %v541
        %v638 = vsub.f32 %v621, %v542
        %v639 = vsel %vm333, %v623, inf
        %v640 = vsel %vm333, %v624, inf
        %v641 = vsel %vm333, %v625, inf
        %v642 = vsel %vm333, %v626, inf
        %v643 = vsel %vm333, %v627, inf
        %v644 = vmin.f32 %v639, %v643
        %v645 = vsel %vm333, %v628, inf
        %v646 = vmin.f32 %v640, %v645
        %v647 = vsel %vm333, %v629, inf
        %v648 = vmin.f32 %v641, %v647
        %v649 = vsel %vm333, %v630, inf
        %v650 = vmin.f32 %v642, %v649
        %v651 = vsel %vm333, %v631, inf
        %v652 = vmin.f32 %v644, %v651
        %v653 = vsel %vm333, %v632, inf
        %v654 = vmin.f32 %v646, %v653
        %v655 = vsel %vm333, %v633, inf
        %v656 = vmin.f32 %v648, %v655
        %v657 = vsel %vm333, %v634, inf
        %v658 = vmin.f32 %v650, %v657
        %v659 = vsel %vm333, %v635, inf
        %v660 = vmin.f32 %v652, %v659
        %v661 = vsel %vm333, %v636, inf
        %v662 = vmin.f32 %v654, %v661
        %v663 = vsel %vm333, %v637, inf
        %v664 = vmin.f32 %v656, %v663
        %v665 = vsel %vm333, %v638, inf
        %v666 = vmin.f32 %v658, %v665
        %v667 = vmin.f32 %v660, %v662
        %v668 = vmin.f32 %v664, %v666
        %v669 = vmin.f32 %v667, %v668
        %v670 = vrot.slane %v669, 4
        %v671 = vmin.f32 %v669, %v670
        %v672 = vrot.slane %v671, 2
        %v673 = vmin.f32 %v671, %v672
        %v674 = vrot.slane %v673, 1
        %v675 = vmin.f32 %v673, %v674
        %v676 = vlaneseq
        %v677 = vshrl.u32 %v676, 7
        %v678 = vadd.s32 %v677, 8
        %v679 = vadd.s32 %v677, 16
        %v680 = vadd.s32 %v677, 24
        %v681 = vadd.s32 %v677, 32
        %v682 = vadd.s32 %v677, 40
        %v683 = vadd.s32 %v677, 48
        %v684 = vadd.s32 %v677, 56
        %v685 = vadd.s32 %v677, 64
        %v686 = vadd.s32 %v677, 72
        %v687 = vadd.s32 %v677, 80
        %v688 = vadd.s32 %v677, 88
        %v689 = vadd.s32 %v677, 96
        %v690 = vadd.s32 %v677, 104
        %v691 = vadd.s32 %v677, 112
        %v692 = vadd.s32 %v677, 120
        %vm693 = vcmp.le.f32.partialorder %v623, %v675
        %vm694 = vcmp.le.f32.partialorder %v624, %v675
        %vm695 = vcmp.le.f32.partialorder %v625, %v675
        %vm696 = vcmp.le.f32.partialorder %v626, %v675
        %vm697 = vcmp.le.f32.partialorder %v627, %v675
        %vm698 = vcmp.le.f32.partialorder %v628, %v675
        %vm699 = vcmp.le.f32.partialorder %v629, %v675
        %vm700 = vcmp.le.f32.partialorder %v630, %v675
        %vm701 = vcmp.le.f32.partialorder %v631, %v675
        %vm702 = vcmp.le.f32.partialorder %v632, %v675
        %vm703 = vcmp.le.f32.partialorder %v633, %v675
        %vm704 = vcmp.le.f32.partialorder %v634, %v675
        %vm705 = vcmp.le.f32.partialorder %v635, %v675
        %vm706 = vcmp.le.f32.partialorder %v636, %v675
        %vm707 = vcmp.le.f32.partialorder %v637, %v675
        %vm708 = vcmp.le.f32.partialorder %v638, %v675
        %v709 = vsel %vm693, %v677, 128
        %v710 = vsel %vm694, %v678, 128
        %v711 = vsel %vm695, %v679, 128
        %v712 = vsel %vm696, %v680, 128
        %v713 = vsel %vm697, %v681, 128
        %v714 = vsel %vm698, %v682, 128
        %v715 = vsel %vm699, %v683, 128
        %v716 = vsel %vm700, %v684, 128
        %v717 = vsel %vm701, %v685, 128
        %v718 = vsel %vm702, %v686, 128
        %v719 = vsel %vm703, %v687, 128
        %v720 = vsel %vm704, %v688, 128
        %v721 = vsel %vm705, %v689, 128
        %v722 = vsel %vm706, %v690, 128
        %v723 = vsel %vm707, %v691, 128
        %v724 = vsel %vm708, %v692, 128
        %v725 = vsel %vm333, %v709, 2147483647
        %v726 = vsel %vm333, %v710, 2147483647
        %v727 = vsel %vm333, %v711, 2147483647
        %v728 = vsel %vm333, %v712, 2147483647
        %v729 = vsel %vm333, %v713, 2147483647
        %vm730 = vcmp.lt.s32.totalorder %v725, %v729
        %v731 = vsel %vm730, %v725, %v729
        %v732 = vsel %vm333, %v714, 2147483647
        %vm733 = vcmp.lt.s32.totalorder %v726, %v732
        %v734 = vsel %vm733, %v726, %v732
        %v735 = vsel %vm333, %v715, 2147483647
        %vm736 = vcmp.lt.s32.totalorder %v727, %v735
        %v737 = vsel %vm736, %v727, %v735
        %v738 = vsel %vm333, %v716, 2147483647
        %vm739 = vcmp.lt.s32.totalorder %v728, %v738
        %v740 = vsel %vm739, %v728, %v738
        %v741 = vsel %vm333, %v717, 2147483647
        %vm742 = vcmp.lt.s32.totalorder %v731, %v741
        %v743 = vsel %vm742, %v731, %v741
        %v744 = vsel %vm333, %v718, 2147483647
        %vm745 = vcmp.lt.s32.totalorder %v734, %v744
        %v746 = vsel %vm745, %v734, %v744
        %v747 = vsel %vm333, %v719, 2147483647
        %vm748 = vcmp.lt.s32.totalorder %v737, %v747
        %v749 = vsel %vm748, %v737, %v747
        %v750 = vsel %vm333, %v720, 2147483647
        %vm751 = vcmp.lt.s32.totalorder %v740, %v750
        %v752 = vsel %vm751, %v740, %v750
        %v753 = vsel %vm333, %v721, 2147483647
        %vm754 = vcmp.lt.s32.totalorder %v743, %v753
        %v755 = vsel %vm754, %v743, %v753
        %v756 = vsel %vm333, %v722, 2147483647
        %vm757 = vcmp.lt.s32.totalorder %v746, %v756
        %v758 = vsel %vm757, %v746, %v756
        %v759 = vsel %vm333, %v723, 2147483647
        %vm760 = vcmp.lt.s32.totalorder %v749, %v759
        %v761 = vsel %vm760, %v749, %v759
        %v762 = vsel %vm333, %v724, 2147483647
        %vm763 = vcmp.lt.s32.totalorder %v752, %v762
        %v764 = vsel %vm763, %v752, %v762
        %vm765 = vcmp.lt.s32.totalorder %v755, %v758
        %v766 = vsel %vm765, %v755, %v758
        %vm767 = vcmp.lt.s32.totalorder %v761, %v764
        %v768 = vsel %vm767, %v761, %v764
        %vm769 = vcmp.lt.s32.totalorder %v766, %v768
        %v770 = vsel %vm769, %v766, %v768
        %v771 = vrot.slane %v770, 4
        %vm772 = vcmp.lt.s32.totalorder %v770, %v771
        %v773 = vsel %vm772, %v770, %v771
        %v774 = vrot.slane %v773, 2
        %vm775 = vcmp.lt.s32.totalorder %v773, %v774
        %v776 = vsel %vm775, %v773, %v774
        %v777 = vrot.slane %v776, 1
        %vm778 = vcmp.lt.s32.totalorder %v776, %v777
        %v779 = vsel %vm778, %v776, %v777
        %s780 = smul.u32 %s28, 64
        %v781 = vlaneseq
        %v782 = vand.u32 %v781, 127
        %v783 = vstv %s780
        %v784 = vadd.s32 %v783, %v782
        %vm785 = vcmp.lt.s32.totalorder %v784, 64
        %v786 = vsel %vm785, %v779, 128
        %vm787 = vcmp.eq.s32.totalorder %v677, %v786
        %vm788 = vcmp.eq.s32.totalorder %v678, %v786
        %vm789 = vcmp.eq.s32.totalorder %v679, %v786
        %vm790 = vcmp.eq.s32.totalorder %v680, %v786
        %vm791 = vcmp.eq.s32.totalorder %v681, %v786
        %vm792 = vcmp.eq.s32.totalorder %v682, %v786
        %vm793 = vcmp.eq.s32.totalorder %v683, %v786
        %vm794 = vcmp.eq.s32.totalorder %v684, %v786
        %vm795 = vcmp.eq.s32.totalorder %v685, %v786
        %vm796 = vcmp.eq.s32.totalorder %v686, %v786
        %vm797 = vcmp.eq.s32.totalorder %v687, %v786
        %vm798 = vcmp.eq.s32.totalorder %v688, %v786
        %vm799 = vcmp.eq.s32.totalorder %v689, %v786
        %vm800 = vcmp.eq.s32.totalorder %v690, %v786
        %vm801 = vcmp.eq.s32.totalorder %v691, %v786
        %vm802 = vcmp.eq.s32.totalorder %v692, %v786
        %v803 = vsel %vm787, 1, 0
        %v804 = vsel %vm788, 1, 0
        %v805 = vsel %vm789, 1, 0
        %v806 = vsel %vm790, 1, 0
        %v807 = vsel %vm791, 1, 0
        %v808 = vsel %vm792, 1, 0
        %v809 = vsel %vm793, 1, 0
        %v810 = vsel %vm794, 1, 0
        %v811 = vsel %vm795, 1, 0
        %v812 = vsel %vm796, 1, 0
        %v813 = vsel %vm797, 1, 0
        %v814 = vsel %vm798, 1, 0
        %v815 = vsel %vm799, 1, 0
        %v816 = vsel %vm800, 1, 0
        %v817 = vsel %vm801, 1, 0
        %v818 = vsel %vm802, 1, 0
        %v819 = vcvt.s32.f32 %v803
        %v820 = vcvt.s32.f32 %v804
        %v821 = vcvt.s32.f32 %v805
        %v822 = vcvt.s32.f32 %v806
        %v823 = vcvt.s32.f32 %v807
        %v824 = vcvt.s32.f32 %v808
        %v825 = vcvt.s32.f32 %v809
        %v826 = vcvt.s32.f32 %v810
        %v827 = vcvt.s32.f32 %v811
        %v828 = vcvt.s32.f32 %v812
        %v829 = vcvt.s32.f32 %v813
        %v830 = vcvt.s32.f32 %v814
        %v831 = vcvt.s32.f32 %v815
        %v832 = vcvt.s32.f32 %v816
        %v833 = vcvt.s32.f32 %v817
        %v834 = vcvt.s32.f32 %v818
        %835 = vxpose.xlu0.b32.start [1/16] %v301, 128
        %836 = vxpose.xlu0.b32.cont [2/16] %v302, 128
        %837 = vxpose.xlu0.b32.cont [3/16] %v303, 128
        %838 = vxpose.xlu0.b32.cont [4/16] %v304, 128
        %839 = vxpose.xlu0.b32.cont [5/16] %v305, 128
        %840 = vxpose.xlu0.b32.cont [6/16] %v306, 128
        %841 = vxpose.xlu0.b32.cont [7/16] %v307, 128
        %842 = vxpose.xlu0.b32.cont [8/16] %v308, 128
        %843 = vxpose.xlu0.b32.cont [9/16] %v309, 128
        %844 = vxpose.xlu0.b32.cont [10/16] %v310, 128
        %845 = vxpose.xlu0.b32.cont [11/16] %v311, 128
        %846 = vxpose.xlu0.b32.cont [12/16] %v312, 128
        %847 = vxpose.xlu0.b32.cont [13/16] %v313, 128
        %848 = vxpose.xlu0.b32.cont [14/16] %v314, 128
        %849 = vxpose.xlu0.b32.cont [15/16] %v315, 128
        %850 = vxpose.xlu0.b32.end [16/16] %v316, 128
        %v851 = vpop.trf.xlu0
        %v852 = vpop.trf.xlu0
        %v853 = vpop.trf.xlu0
        %v854 = vpop.trf.xlu0
        %v855 = vpop.trf.xlu0
        %v856 = vpop.trf.xlu0
        %v857 = vpop.trf.xlu0
        %v858 = vpop.trf.xlu0
        %v859 = vpop.trf.xlu0
        %v860 = vpop.trf.xlu0
        %v861 = vpop.trf.xlu0
        %v862 = vpop.trf.xlu0
        %v863 = vpop.trf.xlu0
        %v864 = vpop.trf.xlu0
        %v865 = vpop.trf.xlu0
        %v866 = vpop.trf.xlu0
        %867 = vmatprep.subr.mxu0 0.0
        %868 = vmatpush1.msra.mxu0 %v819
        %869 = vmatprep.subr.mxu0 0.0
        %870 = vmatpush1.msra.mxu0 %v820
        %871 = vmatprep.subr.mxu0 0.0
        %872 = vmatpush1.msra.mxu0 %v821
        %873 = vmatprep.subr.mxu0 0.0
        %874 = vmatpush1.msra.mxu0 %v822
        %875 = vmatprep.subr.mxu0 0.0
        %876 = vmatpush1.msra.mxu0 %v823
        %877 = vmatprep.subr.mxu0 0.0
        %878 = vmatpush1.msra.mxu0 %v824
        %879 = vmatprep.subr.mxu0 0.0
        %880 = vmatpush1.msra.mxu0 %v825
        %881 = vmatprep.subr.mxu0 0.0
        %882 = vmatpush1.msra.mxu0 %v826
        %883 = vmatprep.subr.mxu0 0.0
        %884 = vmatpush1.msra.mxu0 %v827
        %885 = vmatprep.subr.mxu0 0.0
        %886 = vmatpush1.msra.mxu0 %v828
        %887 = vmatprep.subr.mxu0 0.0
        %888 = vmatpush1.msra.mxu0 %v829
        %889 = vmatprep.subr.mxu0 0.0
        %890 = vmatpush1.msra.mxu0 %v830
        %891 = vmatprep.subr.mxu0 0.0
        %892 = vmatpush1.msra.mxu0 %v831
        %893 = vmatprep.subr.mxu0 0.0
        %894 = vmatpush1.msra.mxu0 %v832
        %895 = vmatprep.subr.mxu0 0.0
        %896 = vmatpush1.msra.mxu0 %v833
        %897 = vmatprep.subr.mxu0 0.0
        %898 = vmatpush1.msra.mxu0 %v834
        %899 = vmatprep.subr.mxu0 0.0
        %900 = vmatpush1.msra.mxu0 0.0
        %901 = vmatprep.subr.mxu0 0.0
        %902 = vmatpush1.msra.mxu0 0.0
        %903 = vmatprep.subr.mxu0 0.0
        %904 = vmatpush1.msra.mxu0 0.0
        %905 = vmatprep.subr.mxu0 0.0
        %906 = vmatpush1.msra.mxu0 0.0
        %907 = vmatprep.subr.mxu0 0.0
        %908 = vmatpush1.msra.mxu0 0.0
        %909 = vmatprep.subr.mxu0 0.0
        %910 = vmatpush1.msra.mxu0 0.0
        %911 = vmatprep.subr.mxu0 0.0
        %912 = vmatpush1.msra.mxu0 0.0
        %913 = vmatprep.subr.mxu0 0.0
        %914 = vmatpush1.msra.mxu0 0.0
        %915 = vmatprep.subr.mxu0 0.0
        %916 = vmatpush1.msra.mxu0 0.0
        %917 = vmatprep.subr.mxu0 0.0
        %918 = vmatpush1.msra.mxu0 0.0
        %919 = vmatprep.subr.mxu0 0.0
        %920 = vmatpush1.msra.mxu0 0.0
        %921 = vmatprep.subr.mxu0 0.0
        %922 = vmatpush1.msra.mxu0 0.0
        %923 = vmatprep.subr.mxu0 0.0
        %924 = vmatpush1.msra.mxu0 0.0
        %925 = vmatprep.subr.mxu0 0.0
        %926 = vmatpush1.msra.mxu0 0.0
        %927 = vmatprep.subr.mxu0 0.0
        %928 = vmatpush1.msra.mxu0 0.0
        %929 = vmatprep.subr.mxu0 0.0
        %930 = vmatpush1.msra.mxu0 0.0
        %931 = vmatprep.mubr.f32.mxu0 0.0
        %932 = vmatmul.mubr.f32.gmra.mrb[0].mxu0 %v851
        %v933 = vpop.f32.mrb[0].mxu0
        %v934 = vadd.f32 0.0, %v933
        %v935 = vpop.f32.mrb[0].mxu0
        %936 = vmatprep.mubr.f32.mxu0 0.0
        %937 = vmatmul.mubr.f32.gmra.mrb[0].mxu0 %v852
        %v938 = vpop.f32.mrb[0].mxu0
        %v939 = vadd.f32 0.0, %v938
        %v940 = vpop.f32.mrb[0].mxu0
        %941 = vmatprep.mubr.f32.mxu0 0.0
        %942 = vmatmul.mubr.f32.gmra.mrb[0].mxu0 %v853
        %v943 = vpop.f32.mrb[0].mxu0
        %v944 = vadd.f32 0.0, %v943
        %v945 = vpop.f32.mrb[0].mxu0
        %946 = vmatprep.mubr.f32.mxu0 0.0
        %947 = vmatmul.mubr.f32.gmra.mrb[0].mxu0 %v854
        %v948 = vpop.f32.mrb[0].mxu0
        %v949 = vadd.f32 0.0, %v948
        %v950 = vpop.f32.mrb[0].mxu0
        %951 = vmatprep.mubr.f32.mxu0 0.0
        %952 = vmatmul.mubr.f32.gmra.mrb[0].mxu0 %v855
        %v953 = vpop.f32.mrb[0].mxu0
        %v954 = vadd.f32 0.0, %v953
        %v955 = vpop.f32.mrb[0].mxu0
        %956 = vmatprep.mubr.f32.mxu0 0.0
        %957 = vmatmul.mubr.f32.gmra.mrb[0].mxu0 %v856
        %v958 = vpop.f32.mrb[0].mxu0
        %v959 = vadd.f32 0.0, %v958
        %v960 = vpop.f32.mrb[0].mxu0
        %961 = vmatprep.mubr.f32.mxu0 0.0
        %962 = vmatmul.mubr.f32.gmra.mrb[0].mxu0 %v857
        %v963 = vpop.f32.mrb[0].mxu0
        %v964 = vadd.f32 0.0, %v963
        %v965 = vpop.f32.mrb[0].mxu0
        %966 = vmatprep.mubr.f32.mxu0 0.0
        %967 = vmatmul.mubr.f32.gmra.mrb[0].mxu0 %v858
        %v968 = vpop.f32.mrb[0].mxu0
        %v969 = vadd.f32 0.0, %v968
        %v970 = vpop.f32.mrb[0].mxu0
        %971 = vdwg.mxu0
        %972 = vst.msk [vmem:[%s243] sm:$0xff] %vm333, %v934
        %973 = vst.msk [vmem:[%s243 + $0x8] sm:$0xff] %vm333, %v939
        %974 = vst.msk [vmem:[%s243 + $0x10] sm:$0xff] %vm333, %v944
        %975 = vst.msk [vmem:[%s243 + $0x18] sm:$0xff] %vm333, %v949
        %976 = vst.msk [vmem:[%s243 + $0x20] sm:$0xff] %vm333, %v954
        %977 = vst.msk [vmem:[%s243 + $0x28] sm:$0xff] %vm333, %v959
        %978 = vst.msk [vmem:[%s243 + $0x30] sm:$0xff] %vm333, %v964
        %979 = vst.msk [vmem:[%s243 + $0x38] sm:$0xff] %vm333, %v969
        %v980 = vld [vmem:[%s269] sm:$0xff]
        %v981 = vld [vmem:[%s269 + $0x8] sm:$0xff]
        %v982 = vld [vmem:[%s269 + $0x10] sm:$0xff]
        %v983 = vld [vmem:[%s269 + $0x18] sm:$0xff]
        %v984 = vld [vmem:[%s269 + $0x20] sm:$0xff]
        %v985 = vld [vmem:[%s269 + $0x28] sm:$0xff]
        %v986 = vld [vmem:[%s269 + $0x30] sm:$0xff]
        %v987 = vld [vmem:[%s269 + $0x38] sm:$0xff]
        %v988 = vld [vmem:[%s269 + $0x40] sm:$0xff]
        %v989 = vld [vmem:[%s269 + $0x48] sm:$0xff]
        %v990 = vld [vmem:[%s269 + $0x50] sm:$0xff]
        %v991 = vld [vmem:[%s269 + $0x58] sm:$0xff]
        %v992 = vld [vmem:[%s269 + $0x60] sm:$0xff]
        %v993 = vld [vmem:[%s269 + $0x68] sm:$0xff]
        %v994 = vld [vmem:[%s269 + $0x70] sm:$0xff]
        %v995 = vld [vmem:[%s269 + $0x78] sm:$0xff]
        %v996 = vsel %vm333, %v819, 0.0
        %997 = vadd.xlane.f32.xlu0 %v996
        %v998 = vpop.xlane.xlu0 %997
        %v999 = vsel %vm333, %v820, 0.0
        %1000 = vadd.xlane.f32.xlu0 %v999
        %v1001 = vpop.xlane.xlu0 %1000
        %v1002 = vsel %vm333, %v821, 0.0
        %1003 = vadd.xlane.f32.xlu0 %v1002
        %v1004 = vpop.xlane.xlu0 %1003
        %v1005 = vsel %vm333, %v822, 0.0
        %1006 = vadd.xlane.f32.xlu0 %v1005
        %v1007 = vpop.xlane.xlu0 %1006
        %v1008 = vsel %vm333, %v823, 0.0
        %1009 = vadd.xlane.f32.xlu0 %v1008
        %v1010 = vpop.xlane.xlu0 %1009
        %v1011 = vsel %vm333, %v824, 0.0
        %1012 = vadd.xlane.f32.xlu0 %v1011
        %v1013 = vpop.xlane.xlu0 %1012
        %v1014 = vsel %vm333, %v825, 0.0
        %1015 = vadd.xlane.f32.xlu0 %v1014
        %v1016 = vpop.xlane.xlu0 %1015
        %v1017 = vsel %vm333, %v826, 0.0
        %1018 = vadd.xlane.f32.xlu0 %v1017
        %v1019 = vpop.xlane.xlu0 %1018
        %v1020 = vsel %vm333, %v827, 0.0
        %1021 = vadd.xlane.f32.xlu0 %v1020
        %v1022 = vpop.xlane.xlu0 %1021
        %v1023 = vsel %vm333, %v828, 0.0
        %1024 = vadd.xlane.f32.xlu0 %v1023
        %v1025 = vpop.xlane.xlu0 %1024
        %v1026 = vsel %vm333, %v829, 0.0
        %1027 = vadd.xlane.f32.xlu0 %v1026
        %v1028 = vpop.xlane.xlu0 %1027
        %v1029 = vsel %vm333, %v830, 0.0
        %1030 = vadd.xlane.f32.xlu0 %v1029
        %v1031 = vpop.xlane.xlu0 %1030
        %v1032 = vsel %vm333, %v831, 0.0
        %1033 = vadd.xlane.f32.xlu0 %v1032
        %v1034 = vpop.xlane.xlu0 %1033
        %v1035 = vsel %vm333, %v832, 0.0
        %1036 = vadd.xlane.f32.xlu0 %v1035
        %v1037 = vpop.xlane.xlu0 %1036
        %v1038 = vsel %vm333, %v833, 0.0
        %1039 = vadd.xlane.f32.xlu0 %v1038
        %v1040 = vpop.xlane.xlu0 %1039
        %v1041 = vsel %vm333, %v834, 0.0
        %1042 = vadd.xlane.f32.xlu0 %v1041
        %v1043 = vpop.xlane.xlu0 %1042
        %v1044 = vadd.f32 %v980, %v998
        %v1045 = vadd.f32 %v981, %v1001
        %v1046 = vadd.f32 %v982, %v1004
        %v1047 = vadd.f32 %v983, %v1007
        %v1048 = vadd.f32 %v984, %v1010
        %v1049 = vadd.f32 %v985, %v1013
        %v1050 = vadd.f32 %v986, %v1016
        %v1051 = vadd.f32 %v987, %v1019
        %v1052 = vadd.f32 %v988, %v1022
        %v1053 = vadd.f32 %v989, %v1025
        %v1054 = vadd.f32 %v990, %v1028
        %v1055 = vadd.f32 %v991, %v1031
        %v1056 = vadd.f32 %v992, %v1034
        %v1057 = vadd.f32 %v993, %v1037
        %v1058 = vadd.f32 %v994, %v1040
        %v1059 = vadd.f32 %v995, %v1043
        %vm1060 = vcmask 7168
        %1061 = vst.msk [vmem:[%s269] sm:$0xff] %vm1060, %v1044
        %1062 = vst.msk [vmem:[%s269 + $0x8] sm:$0xff] %vm1060, %v1045
        %1063 = vst.msk [vmem:[%s269 + $0x10] sm:$0xff] %vm1060, %v1046
        %1064 = vst.msk [vmem:[%s269 + $0x18] sm:$0xff] %vm1060, %v1047
        %1065 = vst.msk [vmem:[%s269 + $0x20] sm:$0xff] %vm1060, %v1048
        %1066 = vst.msk [vmem:[%s269 + $0x28] sm:$0xff] %vm1060, %v1049
        %1067 = vst.msk [vmem:[%s269 + $0x30] sm:$0xff] %vm1060, %v1050
        %1068 = vst.msk [vmem:[%s269 + $0x38] sm:$0xff] %vm1060, %v1051
        %1069 = vst.msk [vmem:[%s269 + $0x40] sm:$0xff] %vm1060, %v1052
        %1070 = vst.msk [vmem:[%s269 + $0x48] sm:$0xff] %vm1060, %v1053
        %1071 = vst.msk [vmem:[%s269 + $0x50] sm:$0xff] %vm1060, %v1054
        %1072 = vst.msk [vmem:[%s269 + $0x58] sm:$0xff] %vm1060, %v1055
        %1073 = vst.msk [vmem:[%s269 + $0x60] sm:$0xff] %vm1060, %v1056
        %1074 = vst.msk [vmem:[%s269 + $0x68] sm:$0xff] %vm1060, %v1057
        %1075 = vst.msk [vmem:[%s269 + $0x70] sm:$0xff] %vm1060, %v1058
        %1076 = vst.msk [vmem:[%s269 + $0x78] sm:$0xff] %vm1060, %v1059
        %v1077 = vsub.f32 %v934, %v293
        %v1078 = vsub.f32 %v939, %v294
        %v1079 = vsub.f32 %v944, %v295
        %v1080 = vsub.f32 %v949, %v296
        %v1081 = vsub.f32 %v954, %v297
        %v1082 = vsub.f32 %v959, %v298
        %v1083 = vsub.f32 %v964, %v299
        %v1084 = vsub.f32 %v969, %v300
        %v1085 = vmul.f32 %v1077, %v1077
        %v1086 = vmul.f32 %v1078, %v1078
        %v1087 = vmul.f32 %v1079, %v1079
        %v1088 = vmul.f32 %v1080, %v1080
        %v1089 = vmul.f32 %v1081, %v1081
        %v1090 = vmul.f32 %v1082, %v1082
        %v1091 = vmul.f32 %v1083, %v1083
        %v1092 = vmul.f32 %v1084, %v1084
        %v1093 = vsel %vm333, %v1085, 0.0
        %v1094 = vsel %vm333, %v1086, 0.0
        %v1095 = vadd.f32 %v1093, %v1094
        %v1096 = vsel %vm333, %v1087, 0.0
        %v1097 = vadd.f32 %v1095, %v1096
        %v1098 = vsel %vm333, %v1088, 0.0
        %v1099 = vadd.f32 %v1097, %v1098
        %v1100 = vsel %vm333, %v1089, 0.0
        %v1101 = vadd.f32 %v1099, %v1100
        %v1102 = vsel %vm333, %v1090, 0.0
        %v1103 = vadd.f32 %v1101, %v1102
        %v1104 = vsel %vm333, %v1091, 0.0
        %v1105 = vadd.f32 %v1103, %v1104
        %v1106 = vsel %vm333, %v1092, 0.0
        %v1107 = vadd.f32 %v1105, %v1106
        %v1108 = vrot.slane %v1107, 4
        %v1109 = vadd.f32 %v1107, %v1108
        %v1110 = vrot.slane %v1109, 2
        %v1111 = vadd.f32 %v1109, %v1110
        %v1112 = vrot.slane %v1111, 1
        %v1113 = vadd.f32 %v1111, %v1112
        %v1114 = vld [vmem:[%s256] sm:$0x1]
        %v1115 = vsel %vm785, %v1113, 0.0
        %v1116 = vadd.f32 %v1114, %v1115
        %vm1117 = vcmask 516096
        %1118 = vst.msk [vmem:[%s256] sm:$0x1] %vm1117, %v1116
        %s1119 = sand.u32 %s115, 1
        %s1120 = scalar_lea.sflag [#allocation3], %s1119
        %s1121 = sand.u32 %s115, 1
        %s1122 = smul.addr %s1121, 64
        %s1123 = scalar_lea.vmem [#allocation2], %s1122
        %p1124 = scmp.lt.s32.totalorder %s27, 1
        %s1125 = scalar_select %p1124, %s27, 1
        %s1126 = smul.addr %s1125, 16
        %s1127 = smul.addr %s1126, 8
        %s1128 = scalar_lea.vmem %s4, %s1127
        %s1129 = sand.u32 %s167, 1
        %s1130 = scalar_lea.sflag [#allocation5], %s1129
        %s1131 = sand.u32 %s167, 1
        %s1132 = scalar_lea.vmem [#allocation4], %s1131
        // Predicated region
        $region37: #{tpu_custom_call.1} parent=31 // pred_check
          %p1133 = pneg %p125
        $region38: #{tpu_custom_call.1} parent=31 // pred_check_branch
          %1135 = sbr.rel (%p1133) target = $region40
        $region39: #{tpu_custom_call.1} parent=31 // pred_region
          %s1137 = ssub.s32 1024, 1024
          %1138 = vsyncadd %s1120, %s1137
          %s1139 = smul.addr %s27, 8
          %s1140 = sadd.s32 %s28, %s1139
          %s1141 = smul.addr %s1140, 128
          %s1142 = scalar_lea.hbm %s3, %s1141
          %s1143 = sshll.u32 %s1123, 4
          %s1144 = int_to_ptr.vmem [resolvable:$true] %s1143
          %1149 = dma.vmem_to_hbm [thread:$0]  %s1144, 1024, %s1142, %s1120, 128, 128, 8
        $region40: #{tpu_custom_call.1} parent=31 // pred_fallthru
          _
        // Predicated region
        $region41: #{tpu_custom_call.1} parent=31 // pred_check
          %p1150 = pneg %p151
        $region42: #{tpu_custom_call.1} parent=31 // pred_check_branch
          %1152 = sbr.rel (%p1150) target = $region44
        $region43: #{tpu_custom_call.1} parent=31 // pred_region
          _
        $region44: #{tpu_custom_call.1} parent=31 // pred_fallthru
          _
        // Predicated region
        $region45: #{tpu_custom_call.1} parent=31 // pred_check
          %p1153 = pneg %p177
        $region46: #{tpu_custom_call.1} parent=31 // pred_check_branch
          %1155 = sbr.rel (%p1153) target = $region48
        $region47: #{tpu_custom_call.1} parent=31 // pred_region
          %s1157 = ssub.s32 16, 16
          %1158 = vsyncadd %s1130, %s1157
          %s1159 = smul.addr %s27, 16
          %s1160 = scalar_lea.hbm %s5, %s1159
          %s1162 = sshll.u32 %s1132, 4
          %s1163 = int_to_ptr.vmem [resolvable:$true] %s1162
          %1165 = dma.vmem_to_hbm [thread:$0]  %s1163, 16, %s1160, %s1130
        $region48: #{tpu_custom_call.1} parent=31 // pred_fallthru
          _
      $region32: #{tpu_custom_call.1} parent=5 // pred_fallthru
        _
      %p1166 = scmp.le.s32.totalorder 2, %s18
      // Predicated region
      $region49: #{tpu_custom_call.1} parent=5 // pred_check
        %p1167 = pneg %p1166
      $region50: #{tpu_custom_call.1} parent=5 // pred_check_branch
        %1169 = sbr.rel (%p1167) target = $region52
      $region51: #{tpu_custom_call.1} parent=5 // pred_region
        %s1170 = ssub.s32 %s18, 2
        // Predicated region
        $region53: #{tpu_custom_call.1} parent=51 // pred_check
          %p1171 = pneg %p131
        $region54: #{tpu_custom_call.1} parent=51 // pred_check_branch
          %1173 = sbr.rel (%p1171) target = $region56
        $region55: #{tpu_custom_call.1} parent=51 // pred_region
          %s1174 = sand.u32 %s116, 1
          %s1175 = scalar_lea.sflag [#allocation3], %s1174
          %s1176 = sand.u32 %s116, 1
          %s1177 = smul.addr %s1176, 64
          %s1178 = scalar_lea.vmem [#allocation2], %s1177
          %1179 = dma.done %s1175, 1024
        $region56: #{tpu_custom_call.1} parent=51 // pred_fallthru
          _
        // Predicated region
        $region57: #{tpu_custom_call.1} parent=51 // pred_check
          %p1180 = pneg %p157
        $region58: #{tpu_custom_call.1} parent=51 // pred_check_branch
          %1182 = sbr.rel (%p1180) target = $region60
        $region59: #{tpu_custom_call.1} parent=51 // pred_region
          %p1183 = scmp.lt.s32.totalorder %s29, 1
          %s1184 = scalar_select %p1183, %s29, 1
          %s1185 = smul.addr %s1184, 16
          %s1186 = smul.addr %s1185, 8
          %s1187 = scalar_lea.vmem %s4, %s1186
        $region60: #{tpu_custom_call.1} parent=51 // pred_fallthru
          _
        // Predicated region
        $region61: #{tpu_custom_call.1} parent=51 // pred_check
          %p1188 = pneg %p183
        $region62: #{tpu_custom_call.1} parent=51 // pred_check_branch
          %1190 = sbr.rel (%p1188) target = $region64
        $region63: #{tpu_custom_call.1} parent=51 // pred_region
          %s1191 = sand.u32 %s168, 1
          %s1192 = scalar_lea.sflag [#allocation5], %s1191
          %s1193 = sand.u32 %s168, 1
          %s1194 = scalar_lea.vmem [#allocation4], %s1193
          %1195 = dma.done %s1192, 16
        $region64: #{tpu_custom_call.1} parent=51 // pred_fallthru
          _
      $region52: #{tpu_custom_call.1} parent=5 // pred_fallthru
        _
    $region6: #{tpu_custom_call.1} parent=1 // loop_footer
      %s22 = sadd.s32 1, %s18
    $region7: #{tpu_custom_call.1} parent=1 // loop_footer_branch
      %17 = sbr.rel target = $region3
    $region8: #{tpu_custom_call.1} parent=1 // loop_exit
      _
    %1196 = vsyncpa [#allocation3], 1
    %s1197 = scalar_lea.sflag [#allocation3], 1
    %1198 = vsyncpa %s1197, 1
    %1199 = vsyncpa [#allocation5], 1
    %s1200 = scalar_lea.sflag [#allocation5], 1
    %1201 = vsyncpa %s1200, 1

</llo_original>
